<compile_context>
chip_gen: v7x
topology: tpu7x:2x2x1
jax: 0.10.0
libtpu: 0.0.40
codegen_flags: <defaults>
</compile_context>

<pallas_src>
import jax
import jax.numpy as jnp
from jax import lax
from jax.experimental import pallas as pl
from jax.experimental.pallas import tpu as pltpu

EPS = 1e-5


def _band_weights(w_oihw, W):
    """Fold the 3 horizontal taps + width zero-padding of a 3x3 conv into
    banded (W*Cin, W*Cout) matrices, one per vertical tap kh=0,1,2."""
    w_hwio = jnp.transpose(w_oihw, (2, 3, 1, 0)).astype(jnp.float32)  # (3,3,Ci,Co)
    bands = []
    for kh in range(3):
        taps = [
            jnp.kron(jnp.eye(W, k=1 - kw, dtype=jnp.float32), w_hwio[kh, kw])
            for kw in range(3)
        ]
        bands.append(taps[0] + taps[1] + taps[2])
    return jnp.stack(bands, axis=0)  # (3, W*Cin, W*Cout)


def _make_basic_block_kernel(N, H, W, C):
    M, WC = N * H, W * C
    inv_count = 1.0 / float(N * H * W)

    def kernel(x_ref, wb1_ref, g1_ref, b1_ref, wb2_ref, g2_ref, b2_ref, out_ref):
        x = x_ref[...]  # (M, W*C) f32, lane-dense; also the residual

        # row masks for the vertical conv taps (h == 0 / h == H-1)
        h_idx = lax.broadcasted_iota(jnp.int32, (M, WC), 0) % H
        top = h_idx == 0
        bot = h_idx == H - 1

        def conv3x3(a, wb_ref):
            # vertical taps via XLU sublane rotations + masks (no padded copy);
            # horizontal taps + width zero-padding live in the banded weights,
            # so each conv is 3 lane-dense MXU matmuls with K = W*C.
            a_dn = jnp.where(top, 0.0, pltpu.roll(a, 1, axis=0))      # row h-1
            a_up = jnp.where(bot, 0.0, pltpu.roll(a, M - 1, axis=0))  # row h+1
            acc = jnp.dot(a_dn, wb_ref[0], preferred_element_type=jnp.float32)
            acc = acc + jnp.dot(a, wb_ref[1], preferred_element_type=jnp.float32)
            acc = acc + jnp.dot(a_up, wb_ref[2], preferred_element_type=jnp.float32)
            return acc

        def batchnorm(y, g_ref, b_ref):
            # one-pass batch stats; channel id == lane % C, so the cross-group
            # lane reduction is log2(W) XLU roll+adds on a (1, W*C) row.
            s1 = jnp.sum(y, axis=0, keepdims=True)
            s2 = jnp.sum(y * y, axis=0, keepdims=True)
            step = C
            while step < WC:
                s1 = s1 + pltpu.roll(s1, step, axis=1)
                s2 = s2 + pltpu.roll(s2, step, axis=1)
                step *= 2
            mean = s1 * inv_count
            var = s2 * inv_count - mean * mean
            scale = g_ref[...] * lax.rsqrt(var + EPS)   # rsqrt -> EUP slot
            shift = b_ref[...] - mean * scale
            return y * scale + shift                    # single fused FMA pass

        y = conv3x3(x, wb1_ref)
        y = jnp.maximum(batchnorm(y, g1_ref, b1_ref), 0.0)
        y = conv3x3(y, wb2_ref)
        y = batchnorm(y, g2_ref, b2_ref)
        out_ref[...] = jnp.maximum(y + x, 0.0)          # residual add + ReLU

    return kernel


def basic_block_pallas(x_nchw, w1_oihw, g1, b1, w2_oihw, g2, b2):
    """x_nchw: (N, C, H, W) -> (N, C, H, W)."""
    N, C, H, W = x_nchw.shape
    assert W & (W - 1) == 0, "lane roll-reduce assumes W is a power of two"
    assert (W * C) % 128 == 0, "working layout should be lane-dense"

    # lane-dense working layout: rows = N*H, lanes = W*C (channel = lane % C).
    # (For a stack of BasicBlocks the NCHW<->NHWC transposes at the boundary
    #  would cancel if the whole model stayed NHWC.)
    x2d = jnp.transpose(x_nchw, (0, 2, 3, 1)).reshape(N * H, W * C)
    x2d = x2d.astype(jnp.float32)
    wb1 = _band_weights(w1_oihw, W)
    wb2 = _band_weights(w2_oihw, W)
    tile = lambda v: jnp.tile(v.astype(jnp.float32), W).reshape(1, W * C)

    out2d = pl.pallas_call(
        _make_basic_block_kernel(N, H, W, C),
        out_shape=jax.ShapeDtypeStruct((N * H, W * C), jnp.float32),
        in_specs=[pl.BlockSpec(memory_space=pltpu.MemorySpace.VMEM)] * 7,
        out_specs=pl.BlockSpec(memory_space=pltpu.MemorySpace.VMEM),
        compiler_params=pltpu.CompilerParams(vmem_limit_bytes=32 * 1024 * 1024),
    )(x2d, wb1, tile(g1), tile(b1), wb2, tile(g2), tile(b2))

    return jnp.transpose(out2d.reshape(N, H, W, C), (0, 3, 1, 2))


def basic_block_ref(x_nchw, w1_oihw, g1, b1, w2_oihw, g2, b2):
    """Pure-JAX reference (NHWC conv via lax) for correctness check."""
    x = jnp.transpose(x_nchw, (0, 2, 3, 1)).astype(jnp.float32)
    w1 = jnp.transpose(w1_oihw, (2, 3, 1, 0)).astype(jnp.float32)
    w2 = jnp.transpose(w2_oihw, (2, 3, 1, 0)).astype(jnp.float32)

    def conv(xx, ww):
        return lax.conv_general_dilated(
            xx, ww, window_strides=(1, 1), padding=((1, 1), (1, 1)),
            dimension_numbers=("NHWC", "HWIO", "NHWC"),
            precision=lax.Precision.HIGHEST)

    def bn(y, gamma, beta):
        mean = jnp.mean(y, axis=(0, 1, 2), keepdims=True)
        var = jnp.mean((y - mean) ** 2, axis=(0, 1, 2), keepdims=True)
        return (y - mean) * lax.rsqrt(var + EPS) * gamma + beta

    y = jax.nn.relu(bn(conv(x, w1), g1, b1))
    y = bn(conv(y, w2), g2, b2)
    y = jax.nn.relu(y + x)
    return jnp.transpose(y, (0, 3, 1, 2))


if __name__ == "__main__":
    # inplanes = planes = 8, stride = 1, downsample = None; W*C = 128 lanes.
    N, C, H, W = 2, 8, 16, 16
    key = jax.random.PRNGKey(0)
    kx, k1, k2, kg1, kb1, kg2, kb2 = jax.random.split(key, 7)

    x = jax.random.normal(kx, (N, C, H, W), jnp.float32)
    w1 = 0.1 * jax.random.normal(k1, (C, C, 3, 3), jnp.float32)   # OIHW, bias=False
    w2 = 0.1 * jax.random.normal(k2, (C, C, 3, 3), jnp.float32)   # OIHW, bias=False
    g1 = 1.0 + 0.1 * jax.random.normal(kg1, (C,), jnp.float32)
    b1 = 0.1 * jax.random.normal(kb1, (C,), jnp.float32)
    g2 = 1.0 + 0.1 * jax.random.normal(kg2, (C,), jnp.float32)
    b2 = 0.1 * jax.random.normal(kb2, (C,), jnp.float32)

    out = jax.jit(basic_block_pallas)(x, w1, g1, b1, w2, g2, b2)
    out = jax.block_until_ready(out)

    ref = basic_block_ref(x, w1, g1, b1, w2, g2, b2)
    assert out.shape == (N, C, H, W)
    max_err = float(jnp.max(jnp.abs(out - ref)))
    assert jnp.allclose(out, ref, atol=1e-3, rtol=1e-3), (
        f"mismatch vs reference (max abs err {max_err})")

    print("KERNEL_OK")
</pallas_src>

<mosaic_0001>
module attributes {stable_mosaic.version = 11 : i64} {
  func.func @kernel(%arg0: memref<32x128xf32, #tpu.memory_space<vmem>>, %arg1: memref<3x128x128xf32, #tpu.memory_space<vmem>>, %arg2: memref<1x128xf32, #tpu.memory_space<vmem>>, %arg3: memref<1x128xf32, #tpu.memory_space<vmem>>, %arg4: memref<3x128x128xf32, #tpu.memory_space<vmem>>, %arg5: memref<1x128xf32, #tpu.memory_space<vmem>>, %arg6: memref<1x128xf32, #tpu.memory_space<vmem>>, %arg7: memref<32x128xf32, #tpu.memory_space<vmem>>) attributes {dimension_semantics = [], scalar_prefetch = 0 : i64, scratch_operands = 0 : i64, tpu.core_type = #tpu.core_type<tc>} {
    %c0 = arith.constant 0 : index
    %c0_0 = arith.constant 0 : index
    %0 = vector.load %arg0[%c0, %c0_0] : memref<32x128xf32, #tpu.memory_space<vmem>>, vector<32x128xf32>
    %1 = tpu.iota {dimensions = array<i32: 0>} : vector<32x128xi32>
    %c16_i32 = arith.constant 16 : i32
    %c0_i32 = arith.constant 0 : i32
    %2 = arith.cmpi eq, %c16_i32, %c0_i32 : i32
    %c1_i32 = arith.constant 1 : i32
    %3 = arith.select %2, %c1_i32, %c16_i32 : i32
    %4 = vector.broadcast %3 : i32 to vector<32x128xi32>
    %5 = arith.remsi %1, %4 : vector<32x128xi32>
    %c0_i32_1 = arith.constant 0 : i32
    %6 = vector.broadcast %c0_i32_1 : i32 to vector<32x128xi32>
    %7 = arith.cmpi ne, %5, %6 : vector<32x128xi32>
    %c0_i32_2 = arith.constant 0 : i32
    %8 = vector.broadcast %c0_i32_2 : i32 to vector<32x128xi32>
    %9 = arith.cmpi slt, %5, %8 : vector<32x128xi32>
    %c0_i32_3 = arith.constant 0 : i32
    %10 = arith.cmpi slt, %3, %c0_i32_3 : i32
    %11 = vector.broadcast %10 : i1 to vector<32x128xi1>
    %12 = vector.broadcast %11 : vector<32x128xi1> to vector<32x128xi1>
    %13 = arith.xori %9, %12 : vector<32x128xi1>
    %14 = arith.andi %13, %7 : vector<32x128xi1>
    %15 = vector.broadcast %3 : i32 to vector<32x128xi32>
    %16 = arith.addi %5, %15 : vector<32x128xi32>
    %17 = arith.select %14, %16, %5 : vector<32x128xi1>, vector<32x128xi32>
    %c0_i32_4 = arith.constant 0 : i32
    %18 = vector.broadcast %c0_i32_4 : i32 to vector<32x128xi32>
    %19 = arith.cmpi eq, %17, %18 : vector<32x128xi32>
    %c15_i32 = arith.constant 15 : i32
    %20 = vector.broadcast %c15_i32 : i32 to vector<32x128xi32>
    %21 = arith.cmpi eq, %17, %20 : vector<32x128xi32>
    %c1_i32_5 = arith.constant 1 : i32
    %22 = tpu.dynamic_rotate %0 by %c1_i32_5 dim 0 : vector<32x128xf32>, i32 -> vector<32x128xf32>
    %cst = arith.constant 0.000000e+00 : f32
    %23 = vector.broadcast %cst : f32 to vector<32x128xf32>
    %24 = arith.select %19, %23, %22 : vector<32x128xi1>, vector<32x128xf32>
    %c31_i32 = arith.constant 31 : i32
    %25 = tpu.dynamic_rotate %0 by %c31_i32 dim 0 : vector<32x128xf32>, i32 -> vector<32x128xf32>
    %cst_6 = arith.constant 0.000000e+00 : f32
    %26 = vector.broadcast %cst_6 : f32 to vector<32x128xf32>
    %27 = arith.select %21, %26, %25 : vector<32x128xi1>, vector<32x128xf32>
    %c0_7 = arith.constant 0 : index
    %c0_8 = arith.constant 0 : index
    %c0_9 = arith.constant 0 : index
    %28 = vector.load %arg1[%c0_7, %c0_8, %c0_9] : memref<3x128x128xf32, #tpu.memory_space<vmem>>, vector<1x128x128xf32>
    %29 = vector.shape_cast %28 : vector<1x128x128xf32> to vector<128x128xf32>
    %cst_10 = arith.constant dense<0.000000e+00> : vector<32x128xf32>
    %30 = tpu.matmul %24, %29, %cst_10 {dimension_numbers = #tpu.dot_dimension_numbers<[1], [0], [0], [1], [0, 0, 1, 1], [], []>} : vector<32x128xf32>, vector<128x128xf32>, vector<32x128xf32> -> vector<32x128xf32>
    %c1 = arith.constant 1 : index
    %c0_11 = arith.constant 0 : index
    %c0_12 = arith.constant 0 : index
    %31 = vector.load %arg1[%c1, %c0_11, %c0_12] : memref<3x128x128xf32, #tpu.memory_space<vmem>>, vector<1x128x128xf32>
    %32 = vector.shape_cast %31 : vector<1x128x128xf32> to vector<128x128xf32>
    %cst_13 = arith.constant dense<0.000000e+00> : vector<32x128xf32>
    %33 = tpu.matmul %0, %32, %cst_13 {dimension_numbers = #tpu.dot_dimension_numbers<[1], [0], [0], [1], [0, 0, 1, 1], [], []>} : vector<32x128xf32>, vector<128x128xf32>, vector<32x128xf32> -> vector<32x128xf32>
    %34 = arith.addf %30, %33 : vector<32x128xf32>
    %c2 = arith.constant 2 : index
    %c0_14 = arith.constant 0 : index
    %c0_15 = arith.constant 0 : index
    %35 = vector.load %arg1[%c2, %c0_14, %c0_15] : memref<3x128x128xf32, #tpu.memory_space<vmem>>, vector<1x128x128xf32>
    %36 = vector.shape_cast %35 : vector<1x128x128xf32> to vector<128x128xf32>
    %cst_16 = arith.constant dense<0.000000e+00> : vector<32x128xf32>
    %37 = tpu.matmul %27, %36, %cst_16 {dimension_numbers = #tpu.dot_dimension_numbers<[1], [0], [0], [1], [0, 0, 1, 1], [], []>} : vector<32x128xf32>, vector<128x128xf32>, vector<32x128xf32> -> vector<32x128xf32>
    %38 = arith.addf %34, %37 : vector<32x128xf32>
    %cst_17 = arith.constant dense<0.000000e+00> : vector<128xf32>
    %39 = vector.multi_reduction <add>, %38, %cst_17 [0] : vector<32x128xf32> to vector<128xf32>
    %40 = vector.shape_cast %39 : vector<128xf32> to vector<1x128xf32>
    %41 = arith.mulf %38, %38 : vector<32x128xf32>
    %cst_18 = arith.constant dense<0.000000e+00> : vector<128xf32>
    %42 = vector.multi_reduction <add>, %41, %cst_18 [0] : vector<32x128xf32> to vector<128xf32>
    %43 = vector.shape_cast %42 : vector<128xf32> to vector<1x128xf32>
    %c8_i32 = arith.constant 8 : i32
    %44 = tpu.dynamic_rotate %40 by %c8_i32 dim 1 : vector<1x128xf32>, i32 -> vector<1x128xf32>
    %45 = arith.addf %40, %44 : vector<1x128xf32>
    %c8_i32_19 = arith.constant 8 : i32
    %46 = tpu.dynamic_rotate %43 by %c8_i32_19 dim 1 : vector<1x128xf32>, i32 -> vector<1x128xf32>
    %47 = arith.addf %43, %46 : vector<1x128xf32>
    %c16_i32_20 = arith.constant 16 : i32
    %48 = tpu.dynamic_rotate %45 by %c16_i32_20 dim 1 : vector<1x128xf32>, i32 -> vector<1x128xf32>
    %49 = arith.addf %45, %48 : vector<1x128xf32>
    %c16_i32_21 = arith.constant 16 : i32
    %50 = tpu.dynamic_rotate %47 by %c16_i32_21 dim 1 : vector<1x128xf32>, i32 -> vector<1x128xf32>
    %51 = arith.addf %47, %50 : vector<1x128xf32>
    %c32_i32 = arith.constant 32 : i32
    %52 = tpu.dynamic_rotate %49 by %c32_i32 dim 1 : vector<1x128xf32>, i32 -> vector<1x128xf32>
    %53 = arith.addf %49, %52 : vector<1x128xf32>
    %c32_i32_22 = arith.constant 32 : i32
    %54 = tpu.dynamic_rotate %51 by %c32_i32_22 dim 1 : vector<1x128xf32>, i32 -> vector<1x128xf32>
    %55 = arith.addf %51, %54 : vector<1x128xf32>
    %c64_i32 = arith.constant 64 : i32
    %56 = tpu.dynamic_rotate %53 by %c64_i32 dim 1 : vector<1x128xf32>, i32 -> vector<1x128xf32>
    %57 = arith.addf %53, %56 : vector<1x128xf32>
    %c64_i32_23 = arith.constant 64 : i32
    %58 = tpu.dynamic_rotate %55 by %c64_i32_23 dim 1 : vector<1x128xf32>, i32 -> vector<1x128xf32>
    %59 = arith.addf %55, %58 : vector<1x128xf32>
    %cst_24 = arith.constant 0.001953125 : f32
    %60 = vector.broadcast %cst_24 : f32 to vector<1x128xf32>
    %61 = arith.mulf %57, %60 : vector<1x128xf32>
    %cst_25 = arith.constant 0.001953125 : f32
    %62 = vector.broadcast %cst_25 : f32 to vector<1x128xf32>
    %63 = arith.mulf %59, %62 : vector<1x128xf32>
    %64 = arith.mulf %61, %61 : vector<1x128xf32>
    %65 = arith.subf %63, %64 : vector<1x128xf32>
    %c0_26 = arith.constant 0 : index
    %c0_27 = arith.constant 0 : index
    %66 = vector.load %arg2[%c0_26, %c0_27] : memref<1x128xf32, #tpu.memory_space<vmem>>, vector<1x128xf32>
    %cst_28 = arith.constant 9.99999974E-6 : f32
    %67 = vector.broadcast %cst_28 : f32 to vector<1x128xf32>
    %68 = arith.addf %65, %67 : vector<1x128xf32>
    %69 = math.rsqrt %68 : vector<1x128xf32>
    %70 = arith.mulf %66, %69 : vector<1x128xf32>
    %c0_29 = arith.constant 0 : index
    %c0_30 = arith.constant 0 : index
    %71 = vector.load %arg3[%c0_29, %c0_30] : memref<1x128xf32, #tpu.memory_space<vmem>>, vector<1x128xf32>
    %72 = arith.mulf %61, %70 : vector<1x128xf32>
    %73 = arith.subf %71, %72 : vector<1x128xf32>
    %74 = vector.broadcast %70 : vector<1x128xf32> to vector<32x128xf32>
    %75 = arith.mulf %38, %74 : vector<32x128xf32>
    %76 = vector.broadcast %73 : vector<1x128xf32> to vector<32x128xf32>
    %77 = arith.addf %75, %76 : vector<32x128xf32>
    %cst_31 = arith.constant 0.000000e+00 : f32
    %78 = vector.broadcast %cst_31 : f32 to vector<32x128xf32>
    %79 = arith.maximumf %77, %78 : vector<32x128xf32>
    %c1_i32_32 = arith.constant 1 : i32
    %80 = tpu.dynamic_rotate %79 by %c1_i32_32 dim 0 : vector<32x128xf32>, i32 -> vector<32x128xf32>
    %cst_33 = arith.constant 0.000000e+00 : f32
    %81 = vector.broadcast %cst_33 : f32 to vector<32x128xf32>
    %82 = arith.select %19, %81, %80 : vector<32x128xi1>, vector<32x128xf32>
    %c31_i32_34 = arith.constant 31 : i32
    %83 = tpu.dynamic_rotate %79 by %c31_i32_34 dim 0 : vector<32x128xf32>, i32 -> vector<32x128xf32>
    %cst_35 = arith.constant 0.000000e+00 : f32
    %84 = vector.broadcast %cst_35 : f32 to vector<32x128xf32>
    %85 = arith.select %21, %84, %83 : vector<32x128xi1>, vector<32x128xf32>
    %c0_36 = arith.constant 0 : index
    %c0_37 = arith.constant 0 : index
    %c0_38 = arith.constant 0 : index
    %86 = vector.load %arg4[%c0_36, %c0_37, %c0_38] : memref<3x128x128xf32, #tpu.memory_space<vmem>>, vector<1x128x128xf32>
    %87 = vector.shape_cast %86 : vector<1x128x128xf32> to vector<128x128xf32>
    %cst_39 = arith.constant dense<0.000000e+00> : vector<32x128xf32>
    %88 = tpu.matmul %82, %87, %cst_39 {dimension_numbers = #tpu.dot_dimension_numbers<[1], [0], [0], [1], [0, 0, 1, 1], [], []>} : vector<32x128xf32>, vector<128x128xf32>, vector<32x128xf32> -> vector<32x128xf32>
    %c1_40 = arith.constant 1 : index
    %c0_41 = arith.constant 0 : index
    %c0_42 = arith.constant 0 : index
    %89 = vector.load %arg4[%c1_40, %c0_41, %c0_42] : memref<3x128x128xf32, #tpu.memory_space<vmem>>, vector<1x128x128xf32>
    %90 = vector.shape_cast %89 : vector<1x128x128xf32> to vector<128x128xf32>
    %cst_43 = arith.constant dense<0.000000e+00> : vector<32x128xf32>
    %91 = tpu.matmul %79, %90, %cst_43 {dimension_numbers = #tpu.dot_dimension_numbers<[1], [0], [0], [1], [0, 0, 1, 1], [], []>} : vector<32x128xf32>, vector<128x128xf32>, vector<32x128xf32> -> vector<32x128xf32>
    %92 = arith.addf %88, %91 : vector<32x128xf32>
    %c2_44 = arith.constant 2 : index
    %c0_45 = arith.constant 0 : index
    %c0_46 = arith.constant 0 : index
    %93 = vector.load %arg4[%c2_44, %c0_45, %c0_46] : memref<3x128x128xf32, #tpu.memory_space<vmem>>, vector<1x128x128xf32>
    %94 = vector.shape_cast %93 : vector<1x128x128xf32> to vector<128x128xf32>
    %cst_47 = arith.constant dense<0.000000e+00> : vector<32x128xf32>
    %95 = tpu.matmul %85, %94, %cst_47 {dimension_numbers = #tpu.dot_dimension_numbers<[1], [0], [0], [1], [0, 0, 1, 1], [], []>} : vector<32x128xf32>, vector<128x128xf32>, vector<32x128xf32> -> vector<32x128xf32>
    %96 = arith.addf %92, %95 : vector<32x128xf32>
    %cst_48 = arith.constant dense<0.000000e+00> : vector<128xf32>
    %97 = vector.multi_reduction <add>, %96, %cst_48 [0] : vector<32x128xf32> to vector<128xf32>
    %98 = vector.shape_cast %97 : vector<128xf32> to vector<1x128xf32>
    %99 = arith.mulf %96, %96 : vector<32x128xf32>
    %cst_49 = arith.constant dense<0.000000e+00> : vector<128xf32>
    %100 = vector.multi_reduction <add>, %99, %cst_49 [0] : vector<32x128xf32> to vector<128xf32>
    %101 = vector.shape_cast %100 : vector<128xf32> to vector<1x128xf32>
    %c8_i32_50 = arith.constant 8 : i32
    %102 = tpu.dynamic_rotate %98 by %c8_i32_50 dim 1 : vector<1x128xf32>, i32 -> vector<1x128xf32>
    %103 = arith.addf %98, %102 : vector<1x128xf32>
    %c8_i32_51 = arith.constant 8 : i32
    %104 = tpu.dynamic_rotate %101 by %c8_i32_51 dim 1 : vector<1x128xf32>, i32 -> vector<1x128xf32>
    %105 = arith.addf %101, %104 : vector<1x128xf32>
    %c16_i32_52 = arith.constant 16 : i32
    %106 = tpu.dynamic_rotate %103 by %c16_i32_52 dim 1 : vector<1x128xf32>, i32 -> vector<1x128xf32>
    %107 = arith.addf %103, %106 : vector<1x128xf32>
    %c16_i32_53 = arith.constant 16 : i32
    %108 = tpu.dynamic_rotate %105 by %c16_i32_53 dim 1 : vector<1x128xf32>, i32 -> vector<1x128xf32>
    %109 = arith.addf %105, %108 : vector<1x128xf32>
    %c32_i32_54 = arith.constant 32 : i32
    %110 = tpu.dynamic_rotate %107 by %c32_i32_54 dim 1 : vector<1x128xf32>, i32 -> vector<1x128xf32>
    %111 = arith.addf %107, %110 : vector<1x128xf32>
    %c32_i32_55 = arith.constant 32 : i32
    %112 = tpu.dynamic_rotate %109 by %c32_i32_55 dim 1 : vector<1x128xf32>, i32 -> vector<1x128xf32>
    %113 = arith.addf %109, %112 : vector<1x128xf32>
    %c64_i32_56 = arith.constant 64 : i32
    %114 = tpu.dynamic_rotate %111 by %c64_i32_56 dim 1 : vector<1x128xf32>, i32 -> vector<1x128xf32>
    %115 = arith.addf %111, %114 : vector<1x128xf32>
    %c64_i32_57 = arith.constant 64 : i32
    %116 = tpu.dynamic_rotate %113 by %c64_i32_57 dim 1 : vector<1x128xf32>, i32 -> vector<1x128xf32>
    %117 = arith.addf %113, %116 : vector<1x128xf32>
    %cst_58 = arith.constant 0.001953125 : f32
    %118 = vector.broadcast %cst_58 : f32 to vector<1x128xf32>
    %119 = arith.mulf %115, %118 : vector<1x128xf32>
    %cst_59 = arith.constant 0.001953125 : f32
    %120 = vector.broadcast %cst_59 : f32 to vector<1x128xf32>
    %121 = arith.mulf %117, %120 : vector<1x128xf32>
    %122 = arith.mulf %119, %119 : vector<1x128xf32>
    %123 = arith.subf %121, %122 : vector<1x128xf32>
    %c0_60 = arith.constant 0 : index
    %c0_61 = arith.constant 0 : index
    %124 = vector.load %arg5[%c0_60, %c0_61] : memref<1x128xf32, #tpu.memory_space<vmem>>, vector<1x128xf32>
    %cst_62 = arith.constant 9.99999974E-6 : f32
    %125 = vector.broadcast %cst_62 : f32 to vector<1x128xf32>
    %126 = arith.addf %123, %125 : vector<1x128xf32>
    %127 = math.rsqrt %126 : vector<1x128xf32>
    %128 = arith.mulf %124, %127 : vector<1x128xf32>
    %c0_63 = arith.constant 0 : index
    %c0_64 = arith.constant 0 : index
    %129 = vector.load %arg6[%c0_63, %c0_64] : memref<1x128xf32, #tpu.memory_space<vmem>>, vector<1x128xf32>
    %130 = arith.mulf %119, %128 : vector<1x128xf32>
    %131 = arith.subf %129, %130 : vector<1x128xf32>
    %132 = vector.broadcast %128 : vector<1x128xf32> to vector<32x128xf32>
    %133 = arith.mulf %96, %132 : vector<32x128xf32>
    %134 = vector.broadcast %131 : vector<1x128xf32> to vector<32x128xf32>
    %135 = arith.addf %133, %134 : vector<32x128xf32>
    %136 = arith.addf %135, %0 : vector<32x128xf32>
    %cst_65 = arith.constant 0.000000e+00 : f32
    %137 = vector.broadcast %cst_65 : f32 to vector<32x128xf32>
    %138 = arith.maximumf %136, %137 : vector<32x128xf32>
    %c0_66 = arith.constant 0 : index
    %c0_67 = arith.constant 0 : index
    %139 = vector.load %arg7[%c0_66, %c0_67] : memref<32x128xf32, #tpu.memory_space<vmem>>, vector<32x128xf32>
    tpu.vector_store %arg7[%c0_66, %c0_67], %138 {strides = array<i32>} : memref<32x128xf32, #tpu.memory_space<vmem>>, vector<32x128xf32>,
    return
  }
}

</mosaic_0001>

<llo_original>
// kernel: tile.23
$region0: #{tile.23}
  #allocation0 [shape = 's32[1]{0}', space=sflag, size = 0x4, scoped, tag = 'scoped memory for tile.23']
  %s0 = inlined_call_operand.vmem [shape: f32[8], index: 0, kind: input, shape index: {}]
  %s1 = inlined_call_operand.vmem [shape: f32[16,8], index: 1, kind: output, shape index: {}]
  // Predicated region
  $region2: #{tile.23} parent=0 // pred_check
    _
  $region3: #{tile.23} parent=0 // pred_check_branch
    %3 = sbr.rel (0) target = $region5
  $region4: #{tile.23} parent=0 // pred_region
    _
  $region5: #{tile.23} parent=0 // pred_fallthru
    _
  %v4 = vld [vmem:[%s0] ss:$0 sm:$0xff]
  %5 = vst [vmem:[%s1] sm:$0xff] %v4
  %s6 = scalar_lea.vmem %s1, 8
  %7 = vst [vmem:[%s6] sm:$0xff] %v4

// kernel: tile.24
$region0: #{tile.24}
  %s0 = inlined_call_operand.vmem [shape: f32[16,8], index: 0, kind: input, shape index: {}]
  %s1 = inlined_call_operand.vmem [shape: f32[1,128], index: 1, kind: output, shape index: {}]
  $region1: #{tile.24} parent=0
    #allocation0 [shape = 'u8[4096]{0}', space=vmem, size = 0x1000, scoped, tag = 'scoped mem for output reshape']
    %v2 = vld [vmem:[%s0] sm:$0x1]
    %vm3 = vcmask 64512
    %4 = vst.msk [vmem:[#allocation0] sm:$0x1] %vm3, %v2
    %s5 = scalar_lea.vmem %s0, 15
    %v6 = vld [vmem:[%s5] sm:$0x1]
    %7 = vrot.lane.b32.xlu0 %v6, 120
    %v8 = vpop.permute.xlu0 %7
    %vm9 = vcmask 1048512
    %10 = vst.msk [vmem:[#allocation0] sm:$0x1] %vm9, %v8
    %s11 = scalar_lea.vmem %s0, 14
    %v12 = vld [vmem:[%s11] sm:$0x1]
    %13 = vrot.lane.b32.xlu0 %v12, 112
    %v14 = vpop.permute.xlu0 %13
    %vm15 = vcmask 982912
    %16 = vst.msk [vmem:[#allocation0] sm:$0x1] %vm15, %v14
    %s17 = scalar_lea.vmem %s0, 13
    %v18 = vld [vmem:[%s17] sm:$0x1]
    %19 = vrot.lane.b32.xlu0 %v18, 104
    %v20 = vpop.permute.xlu0 %19
    %vm21 = vcmask 917312
    %22 = vst.msk [vmem:[#allocation0] sm:$0x1] %vm21, %v20
    %s23 = scalar_lea.vmem %s0, 12
    %v24 = vld [vmem:[%s23] sm:$0x1]
    %25 = vrot.lane.b32.xlu0 %v24, 96
    %v26 = vpop.permute.xlu0 %25
    %vm27 = vcmask 851712
    %28 = vst.msk [vmem:[#allocation0] sm:$0x1] %vm27, %v26
    %s29 = scalar_lea.vmem %s0, 11
    %v30 = vld [vmem:[%s29] sm:$0x1]
    %31 = vrot.lane.b32.xlu0 %v30, 88
    %v32 = vpop.permute.xlu0 %31
    %vm33 = vcmask 786112
    %34 = vst.msk [vmem:[#allocation0] sm:$0x1] %vm33, %v32
    %s35 = scalar_lea.vmem %s0, 10
    %v36 = vld [vmem:[%s35] sm:$0x1]
    %37 = vrot.lane.b32.xlu0 %v36, 80
    %v38 = vpop.permute.xlu0 %37
    %vm39 = vcmask 720512
    %40 = vst.msk [vmem:[#allocation0] sm:$0x1] %vm39, %v38
    %s41 = scalar_lea.vmem %s0, 9
    %v42 = vld [vmem:[%s41] sm:$0x1]
    %43 = vrot.lane.b32.xlu0 %v42, 72
    %v44 = vpop.permute.xlu0 %43
    %vm45 = vcmask 654912
    %46 = vst.msk [vmem:[#allocation0] sm:$0x1] %vm45, %v44
    %s47 = scalar_lea.vmem %s0, 8
    %v48 = vld [vmem:[%s47] sm:$0x1]
    %49 = vrot.lane.b32.xlu0 %v48, 64
    %v50 = vpop.permute.xlu0 %49
    %vm51 = vcmask 589312
    %52 = vst.msk [vmem:[#allocation0] sm:$0x1] %vm51, %v50
    %s53 = scalar_lea.vmem %s0, 7
    %v54 = vld [vmem:[%s53] sm:$0x1]
    %55 = vrot.lane.b32.xlu0 %v54, 56
    %v56 = vpop.permute.xlu0 %55
    %vm57 = vcmask 523712
    %58 = vst.msk [vmem:[#allocation0] sm:$0x1] %vm57, %v56
    %s59 = scalar_lea.vmem %s0, 6
    %v60 = vld [vmem:[%s59] sm:$0x1]
    %61 = vrot.lane.b32.xlu0 %v60, 48
    %v62 = vpop.permute.xlu0 %61
    %vm63 = vcmask 458112
    %64 = vst.msk [vmem:[#allocation0] sm:$0x1] %vm63, %v62
    %s65 = scalar_lea.vmem %s0, 5
    %v66 = vld [vmem:[%s65] sm:$0x1]
    %67 = vrot.lane.b32.xlu0 %v66, 40
    %v68 = vpop.permute.xlu0 %67
    %vm69 = vcmask 392512
    %70 = vst.msk [vmem:[#allocation0] sm:$0x1] %vm69, %v68
    %s71 = scalar_lea.vmem %s0, 4
    %v72 = vld [vmem:[%s71] sm:$0x1]
    %73 = vrot.lane.b32.xlu0 %v72, 32
    %v74 = vpop.permute.xlu0 %73
    %vm75 = vcmask 326912
    %76 = vst.msk [vmem:[#allocation0] sm:$0x1] %vm75, %v74
    %s77 = scalar_lea.vmem %s0, 3
    %v78 = vld [vmem:[%s77] sm:$0x1]
    %79 = vrot.lane.b32.xlu0 %v78, 24
    %v80 = vpop.permute.xlu0 %79
    %vm81 = vcmask 261312
    %82 = vst.msk [vmem:[#allocation0] sm:$0x1] %vm81, %v80
    %s83 = scalar_lea.vmem %s0, 2
    %v84 = vld [vmem:[%s83] sm:$0x1]
    %85 = vrot.lane.b32.xlu0 %v84, 16
    %v86 = vpop.permute.xlu0 %85
    %vm87 = vcmask 195712
    %88 = vst.msk [vmem:[#allocation0] sm:$0x1] %vm87, %v86
    %s89 = scalar_lea.vmem %s0, 1
    %v90 = vld [vmem:[%s89] sm:$0x1]
    %91 = vrot.lane.b32.xlu0 %v90, 8
    %v92 = vpop.permute.xlu0 %91
    %vm93 = vcmask 130112
    %94 = vst.msk [vmem:[#allocation0] sm:$0x1] %vm93, %v92
    %s96 = sshllo.u32 0, 1
    %v98 = vld [vmem:[#allocation0] sm:%s96]
    %s99 = sshllo.u32 0, 1
    %100 = vst [vmem:[%s1] sm:%s99] %v98

// kernel: basic_block_pallas.1
$region0: #{basic_block_pallas.1}
  #allocation0 [shape = 'u32[]', space=smem, size = 0x4, offset = 0x4, fixed_abs, tag = 'smem constant byte address 0x4 - core index']
  #allocation1 [shape = 'u32[144,128]{1,0:T(1,128)}', space=vmem, size = 0x12000, scoped, tag = 'internal scratch']
  %s0 = inlined_call_operand.vmem [shape: f32[32,128], index: 0, kind: input, shape index: {}]
  %s1 = inlined_call_operand.vmem [shape: f32[3,128,128], index: 1, kind: input, shape index: {}]
  %s2 = inlined_call_operand.vmem [shape: f32[1,128], index: 2, kind: input, shape index: {}]
  %s3 = inlined_call_operand.vmem [shape: f32[1,128], index: 3, kind: input, shape index: {}]
  %s4 = inlined_call_operand.vmem [shape: f32[3,128,128], index: 4, kind: input, shape index: {}]
  %s5 = inlined_call_operand.vmem [shape: f32[1,128], index: 5, kind: input, shape index: {}]
  %s6 = inlined_call_operand.vmem [shape: f32[1,128], index: 6, kind: input, shape index: {}]
  %s7 = inlined_call_operand.vmem [shape: f32[32,128], index: 7, kind: output, shape index: {}]
  %s8 = sld [smem:[#allocation0]]
  $region38: #{basic_block_pallas.1} parent=0
    _
  %s10 = ssub.s32 1, %s8
  %s11 = scalar_select 0, %s10, %s8
  // Predicated region
  $region2: #{basic_block_pallas.1} parent=0 // pred_check
    _
  $region3: #{basic_block_pallas.1} parent=0 // pred_check_branch
    %13 = sbr.rel (0) target = $region5
  $region4: #{basic_block_pallas.1} parent=0 // pred_region
    _
  $region5: #{basic_block_pallas.1} parent=0 // pred_fallthru
    _
  // Predicated region
  $region6: #{basic_block_pallas.1} parent=0 // pred_check
    _
  $region7: #{basic_block_pallas.1} parent=0 // pred_check_branch
    %15 = sbr.rel (0) target = $region9
  $region8: #{basic_block_pallas.1} parent=0 // pred_region
    _
  $region9: #{basic_block_pallas.1} parent=0 // pred_fallthru
    _
  // Predicated region
  $region10: #{basic_block_pallas.1} parent=0 // pred_check
    _
  $region11: #{basic_block_pallas.1} parent=0 // pred_check_branch
    %17 = sbr.rel (0) target = $region13
  $region12: #{basic_block_pallas.1} parent=0 // pred_region
    _
  $region13: #{basic_block_pallas.1} parent=0 // pred_fallthru
    _
  // Predicated region
  $region14: #{basic_block_pallas.1} parent=0 // pred_check
    _
  $region15: #{basic_block_pallas.1} parent=0 // pred_check_branch
    %19 = sbr.rel (0) target = $region17
  $region16: #{basic_block_pallas.1} parent=0 // pred_region
    _
  $region17: #{basic_block_pallas.1} parent=0 // pred_fallthru
    _
  // Predicated region
  $region18: #{basic_block_pallas.1} parent=0 // pred_check
    _
  $region19: #{basic_block_pallas.1} parent=0 // pred_check_branch
    %21 = sbr.rel (0) target = $region21
  $region20: #{basic_block_pallas.1} parent=0 // pred_region
    _
  $region21: #{basic_block_pallas.1} parent=0 // pred_fallthru
    _
  // Predicated region
  $region22: #{basic_block_pallas.1} parent=0 // pred_check
    _
  $region23: #{basic_block_pallas.1} parent=0 // pred_check_branch
    %23 = sbr.rel (0) target = $region25
  $region24: #{basic_block_pallas.1} parent=0 // pred_region
    _
  $region25: #{basic_block_pallas.1} parent=0 // pred_fallthru
    _
  // Predicated region
  $region26: #{basic_block_pallas.1} parent=0 // pred_check
    _
  $region27: #{basic_block_pallas.1} parent=0 // pred_check_branch
    %25 = sbr.rel (0) target = $region29
  $region28: #{basic_block_pallas.1} parent=0 // pred_region
    _
  $region29: #{basic_block_pallas.1} parent=0 // pred_fallthru
    _
  %v26 = vld [vmem:[%s0] sm:$0xff]
  %v27 = vld [vmem:[%s0 + $0x8] sm:$0xff]
  %v28 = vld [vmem:[%s0 + $0x10] sm:$0xff]
  %v29 = vld [vmem:[%s0 + $0x18] sm:$0xff]
  %v30 = vlaneseq
  %v31 = vshrl.u32 %v30, 7
  %v32 = vadd.s32 %v31, 8
  %v33 = vadd.s32 %v31, 16
  %v34 = vadd.s32 %v31, 24
  %vm35 = vcmp.lt.s32.totalorder %v31, 0
  %v36 = vsub.s32 0, %v31
  %v37 = vsel %vm35, %v36, %v31
  %v38 = vshrl.u32 %v37, 4
  %v39 = vand.u32 %v37, 15
  %v40 = vsub.s32 0, %v39
  %v41 = vsel %vm35, %v40, %v39
  %vm42 = vcmp.lt.s32.totalorder %v32, 0
  %v43 = vsub.s32 0, %v32
  %v44 = vsel %vm42, %v43, %v32
  %v45 = vshrl.u32 %v44, 4
  %v46 = vand.u32 %v44, 15
  %v47 = vsub.s32 0, %v46
  %v48 = vsel %vm42, %v47, %v46
  %vm49 = vcmp.lt.s32.totalorder %v33, 0
  %v50 = vsub.s32 0, %v33
  %v51 = vsel %vm49, %v50, %v33
  %v52 = vshrl.u32 %v51, 4
  %v53 = vand.u32 %v51, 15
  %v54 = vsub.s32 0, %v53
  %v55 = vsel %vm49, %v54, %v53
  %vm56 = vcmp.lt.s32.totalorder %v34, 0
  %v57 = vsub.s32 0, %v34
  %v58 = vsel %vm56, %v57, %v34
  %v59 = vshrl.u32 %v58, 4
  %v60 = vand.u32 %v58, 15
  %v61 = vsub.s32 0, %v60
  %v62 = vsel %vm56, %v61, %v60
  %vm63 = vcmp.ne.s32.totalorder %v41, 0
  %vm64 = vcmp.ne.s32.totalorder %v48, 0
  %vm65 = vcmp.ne.s32.totalorder %v55, 0
  %vm66 = vcmp.ne.s32.totalorder %v62, 0
  %vm67 = vcmp.lt.s32.totalorder %v41, 0
  %vm68 = vcmp.lt.s32.totalorder %v48, 0
  %vm69 = vcmp.lt.s32.totalorder %v55, 0
  %vm70 = vcmp.lt.s32.totalorder %v62, 0
  %vm71 = vmand %vm67, %vm63
  %vm72 = vmand %vm68, %vm64
  %vm73 = vmand %vm69, %vm65
  %vm74 = vmand %vm70, %vm66
  %v75 = vadd.s32 %v41, 16
  %v76 = vadd.s32 %v48, 16
  %v77 = vadd.s32 %v55, 16
  %v78 = vadd.s32 %v62, 16
  %v79 = vsel %vm71, %v75, %v41
  %v80 = vsel %vm72, %v76, %v48
  %v81 = vsel %vm73, %v77, %v55
  %v82 = vsel %vm74, %v78, %v62
  %vm83 = vcmp.eq.s32.totalorder %v79, 0
  %vm84 = vcmp.eq.s32.totalorder %v80, 0
  %vm85 = vcmp.eq.s32.totalorder %v81, 0
  %vm86 = vcmp.eq.s32.totalorder %v82, 0
  %vm87 = vcmp.eq.s32.totalorder %v79, 15
  %vm88 = vcmp.eq.s32.totalorder %v80, 15
  %vm89 = vcmp.eq.s32.totalorder %v81, 15
  %vm90 = vcmp.eq.s32.totalorder %v82, 15
  %v91 = vrot.slane %v26, 7
  %v92 = vrot.slane %v27, 7
  %v93 = vrot.slane %v28, 7
  %v94 = vrot.slane %v29, 7
  %vm95 = vcmp.lt.s32.totalorder %v31, 1
  %v96 = vsel %vm95, %v93, %v94
  %v97 = vsel %vm95, %v92, %v93
  %v98 = vsel %vm95, %v91, %v92
  %v99 = vsel %vm95, %v94, %v91
  %v100 = vsel %vm83, 0.0, %v99
  %v101 = vsel %vm84, 0.0, %v98
  %v102 = vsel %vm85, 0.0, %v97
  %v103 = vsel %vm86, 0.0, %v96
  %v104 = vrot.slane %v26, 1
  %v105 = vrot.slane %v27, 1
  %v106 = vrot.slane %v28, 1
  %v107 = vrot.slane %v29, 1
  %vm108 = vcmp.lt.s32.totalorder %v31, 7
  %v109 = vsel %vm108, %v106, %v107
  %v110 = vsel %vm108, %v105, %v106
  %v111 = vsel %vm108, %v104, %v105
  %v112 = vsel %vm108, %v107, %v104
  %v113 = vsel %vm87, 0.0, %v111
  %v114 = vsel %vm88, 0.0, %v110
  %v115 = vsel %vm89, 0.0, %v109
  %v116 = vsel %vm90, 0.0, %v112
  %v117 = vld [vmem:[%s1] sm:$0xff]
  %v118 = vld [vmem:[%s1 + $0x8] sm:$0xff]
  %v119 = vld [vmem:[%s1 + $0x10] sm:$0xff]
  %v120 = vld [vmem:[%s1 + $0x18] sm:$0xff]
  %v121 = vld [vmem:[%s1 + $0x20] sm:$0xff]
  %v122 = vld [vmem:[%s1 + $0x28] sm:$0xff]
  %v123 = vld [vmem:[%s1 + $0x30] sm:$0xff]
  %v124 = vld [vmem:[%s1 + $0x38] sm:$0xff]
  %v125 = vld [vmem:[%s1 + $0x40] sm:$0xff]
  %v126 = vld [vmem:[%s1 + $0x48] sm:$0xff]
  %v127 = vld [vmem:[%s1 + $0x50] sm:$0xff]
  %v128 = vld [vmem:[%s1 + $0x58] sm:$0xff]
  %v129 = vld [vmem:[%s1 + $0x60] sm:$0xff]
  %v130 = vld [vmem:[%s1 + $0x68] sm:$0xff]
  %v131 = vld [vmem:[%s1 + $0x70] sm:$0xff]
  %v132 = vld [vmem:[%s1 + $0x78] sm:$0xff]
  %s133 = scalar_lea.vmem %s1, 128
  %v134 = vld [vmem:[%s133] sm:$0xff]
  %v135 = vld [vmem:[%s133 + $0x8] sm:$0xff]
  %v136 = vld [vmem:[%s133 + $0x10] sm:$0xff]
  %v137 = vld [vmem:[%s133 + $0x18] sm:$0xff]
  %v138 = vld [vmem:[%s133 + $0x20] sm:$0xff]
  %v139 = vld [vmem:[%s133 + $0x28] sm:$0xff]
  %v140 = vld [vmem:[%s133 + $0x30] sm:$0xff]
  %v141 = vld [vmem:[%s133 + $0x38] sm:$0xff]
  %v142 = vld [vmem:[%s133 + $0x40] sm:$0xff]
  %v143 = vld [vmem:[%s133 + $0x48] sm:$0xff]
  %v144 = vld [vmem:[%s133 + $0x50] sm:$0xff]
  %v145 = vld [vmem:[%s133 + $0x58] sm:$0xff]
  %v146 = vld [vmem:[%s133 + $0x60] sm:$0xff]
  %v147 = vld [vmem:[%s133 + $0x68] sm:$0xff]
  %v148 = vld [vmem:[%s133 + $0x70] sm:$0xff]
  %v149 = vld [vmem:[%s133 + $0x78] sm:$0xff]
  %150 = vmatprep.subr.mxu0 0.0
  %151 = vmatpush1.msra.mxu0 %v134
  %152 = vmatprep.subr.mxu0 0.0
  %153 = vmatpush1.msra.mxu0 %v135
  %154 = vmatprep.subr.mxu0 0.0
  %155 = vmatpush1.msra.mxu0 %v136
  %156 = vmatprep.subr.mxu0 0.0
  %157 = vmatpush1.msra.mxu0 %v137
  %158 = vmatprep.subr.mxu0 0.0
  %159 = vmatpush1.msra.mxu0 %v138
  %160 = vmatprep.subr.mxu0 0.0
  %161 = vmatpush1.msra.mxu0 %v139
  %162 = vmatprep.subr.mxu0 0.0
  %163 = vmatpush1.msra.mxu0 %v140
  %164 = vmatprep.subr.mxu0 0.0
  %165 = vmatpush1.msra.mxu0 %v141
  %166 = vmatprep.subr.mxu0 0.0
  %167 = vmatpush1.msra.mxu0 %v142
  %168 = vmatprep.subr.mxu0 0.0
  %169 = vmatpush1.msra.mxu0 %v143
  %170 = vmatprep.subr.mxu0 0.0
  %171 = vmatpush1.msra.mxu0 %v144
  %172 = vmatprep.subr.mxu0 0.0
  %173 = vmatpush1.msra.mxu0 %v145
  %174 = vmatprep.subr.mxu0 0.0
  %175 = vmatpush1.msra.mxu0 %v146
  %176 = vmatprep.subr.mxu0 0.0
  %177 = vmatpush1.msra.mxu0 %v147
  %178 = vmatprep.subr.mxu0 0.0
  %179 = vmatpush1.msra.mxu0 %v148
  %180 = vmatprep.subr.mxu0 0.0
  %181 = vmatpush1.msra.mxu0 %v149
  %182 = vmatprep.subr.mxu0 0.0
  %183 = vmatpush1.msra.mxu0 0.0
  %184 = vmatprep.subr.mxu0 0.0
  %185 = vmatpush1.msra.mxu0 0.0
  %186 = vmatprep.subr.mxu0 0.0
  %187 = vmatpush1.msra.mxu0 0.0
  %188 = vmatprep.subr.mxu0 0.0
  %189 = vmatpush1.msra.mxu0 0.0
  %190 = vmatprep.subr.mxu0 0.0
  %191 = vmatpush1.msra.mxu0 0.0
  %192 = vmatprep.subr.mxu0 0.0
  %193 = vmatpush1.msra.mxu0 0.0
  %194 = vmatprep.subr.mxu0 0.0
  %195 = vmatpush1.msra.mxu0 0.0
  %196 = vmatprep.subr.mxu0 0.0
  %197 = vmatpush1.msra.mxu0 0.0
  %198 = vmatprep.subr.mxu0 0.0
  %199 = vmatpush1.msra.mxu0 0.0
  %200 = vmatprep.subr.mxu0 0.0
  %201 = vmatpush1.msra.mxu0 0.0
  %202 = vmatprep.subr.mxu0 0.0
  %203 = vmatpush1.msra.mxu0 0.0
  %204 = vmatprep.subr.mxu0 0.0
  %205 = vmatpush1.msra.mxu0 0.0
  %206 = vmatprep.subr.mxu0 0.0
  %207 = vmatpush1.msra.mxu0 0.0
  %208 = vmatprep.subr.mxu0 0.0
  %209 = vmatpush1.msra.mxu0 0.0
  %210 = vmatprep.subr.mxu0 0.0
  %211 = vmatpush1.msra.mxu0 0.0
  %212 = vmatprep.subr.mxu0 0.0
  %213 = vmatpush1.msra.mxu0 0.0
  %214 = vmatprep.mubr.f32.mxu0 0.0
  %215 = vmatmul.mubr.f32.gmra.mrb[0].mxu0 %v26
  %v216 = vpop.f32.mrb[0].mxu0
  %v217 = vadd.f32 0.0, %v216
  %v218 = vpop.f32.mrb[0].mxu0
  %219 = vmatprep.mubr.f32.mxu0 0.0
  %220 = vmatmul.mubr.f32.gmra.mrb[0].mxu0 %v27
  %v221 = vpop.f32.mrb[0].mxu0
  %v222 = vadd.f32 0.0, %v221
  %v223 = vpop.f32.mrb[0].mxu0
  %224 = vmatprep.mubr.f32.mxu0 0.0
  %225 = vmatmul.mubr.f32.gmra.mrb[0].mxu0 %v28
  %v226 = vpop.f32.mrb[0].mxu0
  %v227 = vadd.f32 0.0, %v226
  %v228 = vpop.f32.mrb[0].mxu0
  %229 = vmatprep.mubr.f32.mxu0 0.0
  %230 = vmatmul.mubr.f32.gmra.mrb[0].mxu0 %v29
  %v231 = vpop.f32.mrb[0].mxu0
  %v232 = vadd.f32 0.0, %v231
  %v233 = vpop.f32.mrb[0].mxu0
  %234 = vdwg.mxu0
  %235 = vmatprep.subr.mxu0 0.0
  %236 = vmatpush1.msra.mxu0 %v117
  %237 = vmatprep.subr.mxu0 0.0
  %238 = vmatpush1.msra.mxu0 %v118
  %239 = vmatprep.subr.mxu0 0.0
  %240 = vmatpush1.msra.mxu0 %v119
  %241 = vmatprep.subr.mxu0 0.0
  %242 = vmatpush1.msra.mxu0 %v120
  %243 = vmatprep.subr.mxu0 0.0
  %244 = vmatpush1.msra.mxu0 %v121
  %245 = vmatprep.subr.mxu0 0.0
  %246 = vmatpush1.msra.mxu0 %v122
  %247 = vmatprep.subr.mxu0 0.0
  %248 = vmatpush1.msra.mxu0 %v123
  %249 = vmatprep.subr.mxu0 0.0
  %250 = vmatpush1.msra.mxu0 %v124
  %251 = vmatprep.subr.mxu0 0.0
  %252 = vmatpush1.msra.mxu0 %v125
  %253 = vmatprep.subr.mxu0 0.0
  %254 = vmatpush1.msra.mxu0 %v126
  %255 = vmatprep.subr.mxu0 0.0
  %256 = vmatpush1.msra.mxu0 %v127
  %257 = vmatprep.subr.mxu0 0.0
  %258 = vmatpush1.msra.mxu0 %v128
  %259 = vmatprep.subr.mxu0 0.0
  %260 = vmatpush1.msra.mxu0 %v129
  %261 = vmatprep.subr.mxu0 0.0
  %262 = vmatpush1.msra.mxu0 %v130
  %263 = vmatprep.subr.mxu0 0.0
  %264 = vmatpush1.msra.mxu0 %v131
  %265 = vmatprep.subr.mxu0 0.0
  %266 = vmatpush1.msra.mxu0 %v132
  %267 = vmatprep.subr.mxu0 0.0
  %268 = vmatpush1.msra.mxu0 0.0
  %269 = vmatprep.subr.mxu0 0.0
  %270 = vmatpush1.msra.mxu0 0.0
  %271 = vmatprep.subr.mxu0 0.0
  %272 = vmatpush1.msra.mxu0 0.0
  %273 = vmatprep.subr.mxu0 0.0
  %274 = vmatpush1.msra.mxu0 0.0
  %275 = vmatprep.subr.mxu0 0.0
  %276 = vmatpush1.msra.mxu0 0.0
  %277 = vmatprep.subr.mxu0 0.0
  %278 = vmatpush1.msra.mxu0 0.0
  %279 = vmatprep.subr.mxu0 0.0
  %280 = vmatpush1.msra.mxu0 0.0
  %281 = vmatprep.subr.mxu0 0.0
  %282 = vmatpush1.msra.mxu0 0.0
  %283 = vmatprep.subr.mxu0 0.0
  %284 = vmatpush1.msra.mxu0 0.0
  %285 = vmatprep.subr.mxu0 0.0
  %286 = vmatpush1.msra.mxu0 0.0
  %287 = vmatprep.subr.mxu0 0.0
  %288 = vmatpush1.msra.mxu0 0.0
  %289 = vmatprep.subr.mxu0 0.0
  %290 = vmatpush1.msra.mxu0 0.0
  %291 = vmatprep.subr.mxu0 0.0
  %292 = vmatpush1.msra.mxu0 0.0
  %293 = vmatprep.subr.mxu0 0.0
  %294 = vmatpush1.msra.mxu0 0.0
  %295 = vmatprep.subr.mxu0 0.0
  %296 = vmatpush1.msra.mxu0 0.0
  %297 = vmatprep.subr.mxu0 0.0
  %298 = vmatpush1.msra.mxu0 0.0
  %299 = vmatprep.mubr.f32.mxu0 0.0
  %300 = vmatmul.mubr.f32.gmra.mrb[0].mxu0 %v100
  %v301 = vpop.f32.mrb[0].mxu0
  %v302 = vadd.f32 %v217, %v301
  %v303 = vpop.f32.mrb[0].mxu0
  %304 = vmatprep.mubr.f32.mxu0 0.0
  %305 = vmatmul.mubr.f32.gmra.mrb[0].mxu0 %v101
  %v306 = vpop.f32.mrb[0].mxu0
  %v307 = vadd.f32 %v222, %v306
  %v308 = vpop.f32.mrb[0].mxu0
  %309 = vmatprep.mubr.f32.mxu0 0.0
  %310 = vmatmul.mubr.f32.gmra.mrb[0].mxu0 %v102
  %v311 = vpop.f32.mrb[0].mxu0
  %v312 = vadd.f32 %v227, %v311
  %v313 = vpop.f32.mrb[0].mxu0
  %314 = vmatprep.mubr.f32.mxu0 0.0
  %315 = vmatmul.mubr.f32.gmra.mrb[0].mxu0 %v103
  %v316 = vpop.f32.mrb[0].mxu0
  %v317 = vadd.f32 %v232, %v316
  %v318 = vpop.f32.mrb[0].mxu0
  %319 = vdwg.mxu0
  %s320 = scalar_lea.vmem %s1, 256
  %v321 = vld [vmem:[%s320] sm:$0xff]
  %v322 = vld [vmem:[%s320 + $0x8] sm:$0xff]
  %v323 = vld [vmem:[%s320 + $0x10] sm:$0xff]
  %v324 = vld [vmem:[%s320 + $0x18] sm:$0xff]
  %v325 = vld [vmem:[%s320 + $0x20] sm:$0xff]
  %v326 = vld [vmem:[%s320 + $0x28] sm:$0xff]
  %v327 = vld [vmem:[%s320 + $0x30] sm:$0xff]
  %v328 = vld [vmem:[%s320 + $0x38] sm:$0xff]
  %v329 = vld [vmem:[%s320 + $0x40] sm:$0xff]
  %v330 = vld [vmem:[%s320 + $0x48] sm:$0xff]
  %v331 = vld [vmem:[%s320 + $0x50] sm:$0xff]
  %v332 = vld [vmem:[%s320 + $0x58] sm:$0xff]
  %v333 = vld [vmem:[%s320 + $0x60] sm:$0xff]
  %v334 = vld [vmem:[%s320 + $0x68] sm:$0xff]
  %v335 = vld [vmem:[%s320 + $0x70] sm:$0xff]
  %v336 = vld [vmem:[%s320 + $0x78] sm:$0xff]
  %337 = vmatprep.subr.mxu0 0.0
  %338 = vmatpush1.msra.mxu0 %v321
  %339 = vmatprep.subr.mxu0 0.0
  %340 = vmatpush1.msra.mxu0 %v322
  %341 = vmatprep.subr.mxu0 0.0
  %342 = vmatpush1.msra.mxu0 %v323
  %343 = vmatprep.subr.mxu0 0.0
  %344 = vmatpush1.msra.mxu0 %v324
  %345 = vmatprep.subr.mxu0 0.0
  %346 = vmatpush1.msra.mxu0 %v325
  %347 = vmatprep.subr.mxu0 0.0
  %348 = vmatpush1.msra.mxu0 %v326
  %349 = vmatprep.subr.mxu0 0.0
  %350 = vmatpush1.msra.mxu0 %v327
  %351 = vmatprep.subr.mxu0 0.0
  %352 = vmatpush1.msra.mxu0 %v328
  %353 = vmatprep.subr.mxu0 0.0
  %354 = vmatpush1.msra.mxu0 %v329
  %355 = vmatprep.subr.mxu0 0.0
  %356 = vmatpush1.msra.mxu0 %v330
  %357 = vmatprep.subr.mxu0 0.0
  %358 = vmatpush1.msra.mxu0 %v331
  %359 = vmatprep.subr.mxu0 0.0
  %360 = vmatpush1.msra.mxu0 %v332
  %361 = vmatprep.subr.mxu0 0.0
  %362 = vmatpush1.msra.mxu0 %v333
  %363 = vmatprep.subr.mxu0 0.0
  %364 = vmatpush1.msra.mxu0 %v334
  %365 = vmatprep.subr.mxu0 0.0
  %366 = vmatpush1.msra.mxu0 %v335
  %367 = vmatprep.subr.mxu0 0.0
  %368 = vmatpush1.msra.mxu0 %v336
  %369 = vmatprep.subr.mxu0 0.0
  %370 = vmatpush1.msra.mxu0 0.0
  %371 = vmatprep.subr.mxu0 0.0
  %372 = vmatpush1.msra.mxu0 0.0
  %373 = vmatprep.subr.mxu0 0.0
  %374 = vmatpush1.msra.mxu0 0.0
  %375 = vmatprep.subr.mxu0 0.0
  %376 = vmatpush1.msra.mxu0 0.0
  %377 = vmatprep.subr.mxu0 0.0
  %378 = vmatpush1.msra.mxu0 0.0
  %379 = vmatprep.subr.mxu0 0.0
  %380 = vmatpush1.msra.mxu0 0.0
  %381 = vmatprep.subr.mxu0 0.0
  %382 = vmatpush1.msra.mxu0 0.0
  %383 = vmatprep.subr.mxu0 0.0
  %384 = vmatpush1.msra.mxu0 0.0
  %385 = vmatprep.subr.mxu0 0.0
  %386 = vmatpush1.msra.mxu0 0.0
  %387 = vmatprep.subr.mxu0 0.0
  %388 = vmatpush1.msra.mxu0 0.0
  %389 = vmatprep.subr.mxu0 0.0
  %390 = vmatpush1.msra.mxu0 0.0
  %391 = vmatprep.subr.mxu0 0.0
  %392 = vmatpush1.msra.mxu0 0.0
  %393 = vmatprep.subr.mxu0 0.0
  %394 = vmatpush1.msra.mxu0 0.0
  %395 = vmatprep.subr.mxu0 0.0
  %396 = vmatpush1.msra.mxu0 0.0
  %397 = vmatprep.subr.mxu0 0.0
  %398 = vmatpush1.msra.mxu0 0.0
  %399 = vmatprep.subr.mxu0 0.0
  %400 = vmatpush1.msra.mxu0 0.0
  %401 = vmatprep.mubr.f32.mxu0 0.0
  %402 = vmatmul.mubr.f32.gmra.mrb[0].mxu0 %v113
  %v403 = vpop.f32.mrb[0].mxu0
  %v404 = vadd.f32 0.0, %v403
  %v405 = vpop.f32.mrb[0].mxu0
  %406 = vmatprep.mubr.f32.mxu0 0.0
  %407 = vmatmul.mubr.f32.gmra.mrb[0].mxu0 %v114
  %v408 = vpop.f32.mrb[0].mxu0
  %v409 = vadd.f32 0.0, %v408
  %v410 = vpop.f32.mrb[0].mxu0
  %411 = vmatprep.mubr.f32.mxu0 0.0
  %412 = vmatmul.mubr.f32.gmra.mrb[0].mxu0 %v115
  %v413 = vpop.f32.mrb[0].mxu0
  %v414 = vadd.f32 0.0, %v413
  %v415 = vpop.f32.mrb[0].mxu0
  %416 = vmatprep.mubr.f32.mxu0 0.0
  %417 = vmatmul.mubr.f32.gmra.mrb[0].mxu0 %v116
  %v418 = vpop.f32.mrb[0].mxu0
  %v419 = vadd.f32 0.0, %v418
  %v420 = vpop.f32.mrb[0].mxu0
  %421 = vdwg.mxu0
  %v422 = vadd.f32 %v302, %v404
  %v423 = vadd.f32 %v307, %v409
  %v424 = vadd.f32 %v312, %v414
  %v425 = vadd.f32 %v317, %v419
  %v426 = vadd.f32 %v422, %v423
  %v427 = vadd.f32 %v426, %v424
  %v428 = vadd.f32 %v427, %v425
  %v429 = vrot.slane %v428, 4
  %v430 = vadd.f32 %v428, %v429
  %v431 = vrot.slane %v430, 2
  %v432 = vadd.f32 %v430, %v431
  %v433 = vrot.slane %v432, 1
  %v434 = vadd.f32 %v432, %v433
  %v435 = vmul.f32 %v422, %v422
  %v436 = vmul.f32 %v423, %v423
  %v437 = vmul.f32 %v424, %v424
  %v438 = vmul.f32 %v425, %v425
  %v439 = vadd.f32 %v435, %v436
  %v440 = vadd.f32 %v439, %v437
  %v441 = vadd.f32 %v440, %v438
  %v442 = vrot.slane %v441, 4
  %v443 = vadd.f32 %v441, %v442
  %v444 = vrot.slane %v443, 2
  %v445 = vadd.f32 %v443, %v444
  %v446 = vrot.slane %v445, 1
  %v447 = vadd.f32 %v445, %v446
  %448 = vrot.lane.b32.xlu0 %v434, 8
  %v449 = vpop.permute.xlu0 %448
  %v450 = vadd.f32 %v434, %v449
  %451 = vrot.lane.b32.xlu0 %v447, 8
  %v452 = vpop.permute.xlu0 %451
  %v453 = vadd.f32 %v447, %v452
  %454 = vrot.lane.b32.xlu0 %v450, 16
  %v455 = vpop.permute.xlu0 %454
  %v456 = vadd.f32 %v450, %v455
  %457 = vrot.lane.b32.xlu0 %v453, 16
  %v458 = vpop.permute.xlu0 %457
  %v459 = vadd.f32 %v453, %v458
  %460 = vrot.lane.b32.xlu0 %v456, 32
  %v461 = vpop.permute.xlu0 %460
  %v462 = vadd.f32 %v456, %v461
  %463 = vrot.lane.b32.xlu0 %v459, 32
  %v464 = vpop.permute.xlu0 %463
  %v465 = vadd.f32 %v459, %v464
  %466 = vrot.lane.b32.xlu0 %v462, 64
  %v467 = vpop.permute.xlu0 %466
  %v468 = vadd.f32 %v462, %v467
  %469 = vrot.lane.b32.xlu0 %v465, 64
  %v470 = vpop.permute.xlu0 %469
  %v471 = vadd.f32 %v465, %v470
  %v472 = vmul.f32 %v468, 0.001953125
  %v473 = vmul.f32 %v471, 0.001953125
  %v474 = vmul.f32 %v472, %v472
  %v475 = vsub.f32 %v473, %v474
  %v476 = vld [vmem:[%s2] sm:$0x1]
  %v477 = vadd.f32 %v475, 1e-05
  %v478 = vrsqrt.pop %v477
  %v479 = vmul.f32 %v476, %v478
  %v480 = vld [vmem:[%s3] sm:$0x1]
  %v481 = vmul.f32 %v472, %v479
  %v482 = vsub.f32 %v480, %v481
  %v484 = vlaneseq
  %v485 = vshrl.u32 %v484, 7
  %v486 = vsub.s32 0, %v485
  %v487 = vrot.slane %v479, %v486
  %v489 = vmul.f32 %v422, %v487
  %v490 = vmul.f32 %v423, %v487
  %v491 = vmul.f32 %v424, %v487
  %v492 = vmul.f32 %v425, %v487
  %v494 = vlaneseq
  %v495 = vshrl.u32 %v494, 7
  %v496 = vsub.s32 0, %v495
  %v497 = vrot.slane %v482, %v496
  %v499 = vadd.f32 %v489, %v497
  %v500 = vadd.f32 %v490, %v497
  %v501 = vadd.f32 %v491, %v497
  %v502 = vadd.f32 %v492, %v497
  %v503 = vmax.f32 %v499, 0.0
  %v504 = vmax.f32 %v500, 0.0
  %v505 = vmax.f32 %v501, 0.0
  %v506 = vmax.f32 %v502, 0.0
  %v507 = vrot.slane %v503, 7
  %v508 = vrot.slane %v504, 7
  %v509 = vrot.slane %v505, 7
  %v510 = vrot.slane %v506, 7
  %v511 = vsel %vm95, %v509, %v510
  %v512 = vsel %vm95, %v508, %v509
  %v513 = vsel %vm95, %v507, %v508
  %v514 = vsel %vm95, %v510, %v507
  %v515 = vsel %vm83, 0.0, %v514
  %v516 = vsel %vm84, 0.0, %v513
  %v517 = vsel %vm85, 0.0, %v512
  %v518 = vsel %vm86, 0.0, %v511
  %v519 = vrot.slane %v503, 1
  %v520 = vrot.slane %v504, 1
  %v521 = vrot.slane %v505, 1
  %v522 = vrot.slane %v506, 1
  %v523 = vsel %vm108, %v521, %v522
  %v524 = vsel %vm108, %v520, %v521
  %v525 = vsel %vm108, %v519, %v520
  %v526 = vsel %vm108, %v522, %v519
  %v527 = vsel %vm87, 0.0, %v525
  %v528 = vsel %vm88, 0.0, %v524
  %v529 = vsel %vm89, 0.0, %v523
  %v530 = vsel %vm90, 0.0, %v526
  %v531 = vld [vmem:[%s4] sm:$0xff]
  %v532 = vld [vmem:[%s4 + $0x8] sm:$0xff]
  %v533 = vld [vmem:[%s4 + $0x10] sm:$0xff]
  %v534 = vld [vmem:[%s4 + $0x18] sm:$0xff]
  %v535 = vld [vmem:[%s4 + $0x20] sm:$0xff]
  %v536 = vld [vmem:[%s4 + $0x28] sm:$0xff]
  %v537 = vld [vmem:[%s4 + $0x30] sm:$0xff]
  %v538 = vld [vmem:[%s4 + $0x38] sm:$0xff]
  %v539 = vld [vmem:[%s4 + $0x40] sm:$0xff]
  %v540 = vld [vmem:[%s4 + $0x48] sm:$0xff]
  %v541 = vld [vmem:[%s4 + $0x50] sm:$0xff]
  %v542 = vld [vmem:[%s4 + $0x58] sm:$0xff]
  %v543 = vld [vmem:[%s4 + $0x60] sm:$0xff]
  %v544 = vld [vmem:[%s4 + $0x68] sm:$0xff]
  %v545 = vld [vmem:[%s4 + $0x70] sm:$0xff]
  %v546 = vld [vmem:[%s4 + $0x78] sm:$0xff]
  %s547 = scalar_lea.vmem %s4, 128
  %v548 = vld [vmem:[%s547] sm:$0xff]
  %v549 = vld [vmem:[%s547 + $0x8] sm:$0xff]
  %v550 = vld [vmem:[%s547 + $0x10] sm:$0xff]
  %v551 = vld [vmem:[%s547 + $0x18] sm:$0xff]
  %v552 = vld [vmem:[%s547 + $0x20] sm:$0xff]
  %v553 = vld [vmem:[%s547 + $0x28] sm:$0xff]
  %v554 = vld [vmem:[%s547 + $0x30] sm:$0xff]
  %v555 = vld [vmem:[%s547 + $0x38] sm:$0xff]
  %v556 = vld [vmem:[%s547 + $0x40] sm:$0xff]
  %v557 = vld [vmem:[%s547 + $0x48] sm:$0xff]
  %v558 = vld [vmem:[%s547 + $0x50] sm:$0xff]
  %v559 = vld [vmem:[%s547 + $0x58] sm:$0xff]
  %v560 = vld [vmem:[%s547 + $0x60] sm:$0xff]
  %v561 = vld [vmem:[%s547 + $0x68] sm:$0xff]
  %v562 = vld [vmem:[%s547 + $0x70] sm:$0xff]
  %v563 = vld [vmem:[%s547 + $0x78] sm:$0xff]
  %564 = vmatprep.subr.mxu0 0.0
  %565 = vmatpush1.msra.mxu0 %v548
  %566 = vmatprep.subr.mxu0 0.0
  %567 = vmatpush1.msra.mxu0 %v549
  %568 = vmatprep.subr.mxu0 0.0
  %569 = vmatpush1.msra.mxu0 %v550
  %570 = vmatprep.subr.mxu0 0.0
  %571 = vmatpush1.msra.mxu0 %v551
  %572 = vmatprep.subr.mxu0 0.0
  %573 = vmatpush1.msra.mxu0 %v552
  %574 = vmatprep.subr.mxu0 0.0
  %575 = vmatpush1.msra.mxu0 %v553
  %576 = vmatprep.subr.mxu0 0.0
  %577 = vmatpush1.msra.mxu0 %v554
  %578 = vmatprep.subr.mxu0 0.0
  %579 = vmatpush1.msra.mxu0 %v555
  %580 = vmatprep.subr.mxu0 0.0
  %581 = vmatpush1.msra.mxu0 %v556
  %582 = vmatprep.subr.mxu0 0.0
  %583 = vmatpush1.msra.mxu0 %v557
  %584 = vmatprep.subr.mxu0 0.0
  %585 = vmatpush1.msra.mxu0 %v558
  %586 = vmatprep.subr.mxu0 0.0
  %587 = vmatpush1.msra.mxu0 %v559
  %588 = vmatprep.subr.mxu0 0.0
  %589 = vmatpush1.msra.mxu0 %v560
  %590 = vmatprep.subr.mxu0 0.0
  %591 = vmatpush1.msra.mxu0 %v561
  %592 = vmatprep.subr.mxu0 0.0
  %593 = vmatpush1.msra.mxu0 %v562
  %594 = vmatprep.subr.mxu0 0.0
  %595 = vmatpush1.msra.mxu0 %v563
  %596 = vmatprep.subr.mxu0 0.0
  %597 = vmatpush1.msra.mxu0 0.0
  %598 = vmatprep.subr.mxu0 0.0
  %599 = vmatpush1.msra.mxu0 0.0
  %600 = vmatprep.subr.mxu0 0.0
  %601 = vmatpush1.msra.mxu0 0.0
  %602 = vmatprep.subr.mxu0 0.0
  %603 = vmatpush1.msra.mxu0 0.0
  %604 = vmatprep.subr.mxu0 0.0
  %605 = vmatpush1.msra.mxu0 0.0
  %606 = vmatprep.subr.mxu0 0.0
  %607 = vmatpush1.msra.mxu0 0.0
  %608 = vmatprep.subr.mxu0 0.0
  %609 = vmatpush1.msra.mxu0 0.0
  %610 = vmatprep.subr.mxu0 0.0
  %611 = vmatpush1.msra.mxu0 0.0
  %612 = vmatprep.subr.mxu0 0.0
  %613 = vmatpush1.msra.mxu0 0.0
  %614 = vmatprep.subr.mxu0 0.0
  %615 = vmatpush1.msra.mxu0 0.0
  %616 = vmatprep.subr.mxu0 0.0
  %617 = vmatpush1.msra.mxu0 0.0
  %618 = vmatprep.subr.mxu0 0.0
  %619 = vmatpush1.msra.mxu0 0.0
  %620 = vmatprep.subr.mxu0 0.0
  %621 = vmatpush1.msra.mxu0 0.0
  %622 = vmatprep.subr.mxu0 0.0
  %623 = vmatpush1.msra.mxu0 0.0
  %624 = vmatprep.subr.mxu0 0.0
  %625 = vmatpush1.msra.mxu0 0.0
  %626 = vmatprep.subr.mxu0 0.0
  %627 = vmatpush1.msra.mxu0 0.0
  %628 = vmatprep.mubr.f32.mxu0 0.0
  %629 = vmatmul.mubr.f32.gmra.mrb[0].mxu0 %v503
  %v630 = vpop.f32.mrb[0].mxu0
  %v631 = vadd.f32 0.0, %v630
  %v632 = vpop.f32.mrb[0].mxu0
  %633 = vmatprep.mubr.f32.mxu0 0.0
  %634 = vmatmul.mubr.f32.gmra.mrb[0].mxu0 %v504
  %v635 = vpop.f32.mrb[0].mxu0
  %v636 = vadd.f32 0.0, %v635
  %v637 = vpop.f32.mrb[0].mxu0
  %638 = vmatprep.mubr.f32.mxu0 0.0
  %639 = vmatmul.mubr.f32.gmra.mrb[0].mxu0 %v505
  %v640 = vpop.f32.mrb[0].mxu0
  %v641 = vadd.f32 0.0, %v640
  %v642 = vpop.f32.mrb[0].mxu0
  %643 = vmatprep.mubr.f32.mxu0 0.0
  %644 = vmatmul.mubr.f32.gmra.mrb[0].mxu0 %v506
  %v645 = vpop.f32.mrb[0].mxu0
  %v646 = vadd.f32 0.0, %v645
  %v647 = vpop.f32.mrb[0].mxu0
  %648 = vdwg.mxu0
  %649 = vmatprep.subr.mxu0 0.0
  %650 = vmatpush1.msra.mxu0 %v531
  %651 = vmatprep.subr.mxu0 0.0
  %652 = vmatpush1.msra.mxu0 %v532
  %653 = vmatprep.subr.mxu0 0.0
  %654 = vmatpush1.msra.mxu0 %v533
  %655 = vmatprep.subr.mxu0 0.0
  %656 = vmatpush1.msra.mxu0 %v534
  %657 = vmatprep.subr.mxu0 0.0
  %658 = vmatpush1.msra.mxu0 %v535
  %659 = vmatprep.subr.mxu0 0.0
  %660 = vmatpush1.msra.mxu0 %v536
  %661 = vmatprep.subr.mxu0 0.0
  %662 = vmatpush1.msra.mxu0 %v537
  %663 = vmatprep.subr.mxu0 0.0
  %664 = vmatpush1.msra.mxu0 %v538
  %665 = vmatprep.subr.mxu0 0.0
  %666 = vmatpush1.msra.mxu0 %v539
  %667 = vmatprep.subr.mxu0 0.0
  %668 = vmatpush1.msra.mxu0 %v540
  %669 = vmatprep.subr.mxu0 0.0
  %670 = vmatpush1.msra.mxu0 %v541
  %671 = vmatprep.subr.mxu0 0.0
  %672 = vmatpush1.msra.mxu0 %v542
  %673 = vmatprep.subr.mxu0 0.0
  %674 = vmatpush1.msra.mxu0 %v543
  %675 = vmatprep.subr.mxu0 0.0
  %676 = vmatpush1.msra.mxu0 %v544
  %677 = vmatprep.subr.mxu0 0.0
  %678 = vmatpush1.msra.mxu0 %v545
  %679 = vmatprep.subr.mxu0 0.0
  %680 = vmatpush1.msra.mxu0 %v546
  %681 = vmatprep.subr.mxu0 0.0
  %682 = vmatpush1.msra.mxu0 0.0
  %683 = vmatprep.subr.mxu0 0.0
  %684 = vmatpush1.msra.mxu0 0.0
  %685 = vmatprep.subr.mxu0 0.0
  %686 = vmatpush1.msra.mxu0 0.0
  %687 = vmatprep.subr.mxu0 0.0
  %688 = vmatpush1.msra.mxu0 0.0
  %689 = vmatprep.subr.mxu0 0.0
  %690 = vmatpush1.msra.mxu0 0.0
  %691 = vmatprep.subr.mxu0 0.0
  %692 = vmatpush1.msra.mxu0 0.0
  %693 = vmatprep.subr.mxu0 0.0
  %694 = vmatpush1.msra.mxu0 0.0
  %695 = vmatprep.subr.mxu0 0.0
  %696 = vmatpush1.msra.mxu0 0.0
  %697 = vmatprep.subr.mxu0 0.0
  %698 = vmatpush1.msra.mxu0 0.0
  %699 = vmatprep.subr.mxu0 0.0
  %700 = vmatpush1.msra.mxu0 0.0
  %701 = vmatprep.subr.mxu0 0.0
  %702 = vmatpush1.msra.mxu0 0.0
  %703 = vmatprep.subr.mxu0 0.0
  %704 = vmatpush1.msra.mxu0 0.0
  %705 = vmatprep.subr.mxu0 0.0
  %706 = vmatpush1.msra.mxu0 0.0
  %707 = vmatprep.subr.mxu0 0.0
  %708 = vmatpush1.msra.mxu0 0.0
  %709 = vmatprep.subr.mxu0 0.0
  %710 = vmatpush1.msra.mxu0 0.0
  %711 = vmatprep.subr.mxu0 0.0
  %712 = vmatpush1.msra.mxu0 0.0
  %713 = vmatprep.mubr.f32.mxu0 0.0
  %714 = vmatmul.mubr.f32.gmra.mrb[0].mxu0 %v515
  %v715 = vpop.f32.mrb[0].mxu0
  %v716 = vadd.f32 %v631, %v715
  %v717 = vpop.f32.mrb[0].mxu0
  %718 = vmatprep.mubr.f32.mxu0 0.0
  %719 = vmatmul.mubr.f32.gmra.mrb[0].mxu0 %v516
  %v720 = vpop.f32.mrb[0].mxu0
  %v721 = vadd.f32 %v636, %v720
  %v722 = vpop.f32.mrb[0].mxu0
  %723 = vmatprep.mubr.f32.mxu0 0.0
  %724 = vmatmul.mubr.f32.gmra.mrb[0].mxu0 %v517
  %v725 = vpop.f32.mrb[0].mxu0
  %v726 = vadd.f32 %v641, %v725
  %v727 = vpop.f32.mrb[0].mxu0
  %728 = vmatprep.mubr.f32.mxu0 0.0
  %729 = vmatmul.mubr.f32.gmra.mrb[0].mxu0 %v518
  %v730 = vpop.f32.mrb[0].mxu0
  %v731 = vadd.f32 %v646, %v730
  %v732 = vpop.f32.mrb[0].mxu0
  %733 = vdwg.mxu0
  %s734 = scalar_lea.vmem %s4, 256
  %v735 = vld [vmem:[%s734] sm:$0xff]
  %v736 = vld [vmem:[%s734 + $0x8] sm:$0xff]
  %v737 = vld [vmem:[%s734 + $0x10] sm:$0xff]
  %v738 = vld [vmem:[%s734 + $0x18] sm:$0xff]
  %v739 = vld [vmem:[%s734 + $0x20] sm:$0xff]
  %v740 = vld [vmem:[%s734 + $0x28] sm:$0xff]
  %v741 = vld [vmem:[%s734 + $0x30] sm:$0xff]
  %v742 = vld [vmem:[%s734 + $0x38] sm:$0xff]
  %v743 = vld [vmem:[%s734 + $0x40] sm:$0xff]
  %v744 = vld [vmem:[%s734 + $0x48] sm:$0xff]
  %v745 = vld [vmem:[%s734 + $0x50] sm:$0xff]
  %v746 = vld [vmem:[%s734 + $0x58] sm:$0xff]
  %v747 = vld [vmem:[%s734 + $0x60] sm:$0xff]
  %v748 = vld [vmem:[%s734 + $0x68] sm:$0xff]
  %v749 = vld [vmem:[%s734 + $0x70] sm:$0xff]
  %v750 = vld [vmem:[%s734 + $0x78] sm:$0xff]
  %751 = vmatprep.subr.mxu0 0.0
  %752 = vmatpush1.msra.mxu0 %v735
  %753 = vmatprep.subr.mxu0 0.0
  %754 = vmatpush1.msra.mxu0 %v736
  %755 = vmatprep.subr.mxu0 0.0
  %756 = vmatpush1.msra.mxu0 %v737
  %757 = vmatprep.subr.mxu0 0.0
  %758 = vmatpush1.msra.mxu0 %v738
  %759 = vmatprep.subr.mxu0 0.0
  %760 = vmatpush1.msra.mxu0 %v739
  %761 = vmatprep.subr.mxu0 0.0
  %762 = vmatpush1.msra.mxu0 %v740
  %763 = vmatprep.subr.mxu0 0.0
  %764 = vmatpush1.msra.mxu0 %v741
  %765 = vmatprep.subr.mxu0 0.0
  %766 = vmatpush1.msra.mxu0 %v742
  %767 = vmatprep.subr.mxu0 0.0
  %768 = vmatpush1.msra.mxu0 %v743
  %769 = vmatprep.subr.mxu0 0.0
  %770 = vmatpush1.msra.mxu0 %v744
  %771 = vmatprep.subr.mxu0 0.0
  %772 = vmatpush1.msra.mxu0 %v745
  %773 = vmatprep.subr.mxu0 0.0
  %774 = vmatpush1.msra.mxu0 %v746
  %775 = vmatprep.subr.mxu0 0.0
  %776 = vmatpush1.msra.mxu0 %v747
  %777 = vmatprep.subr.mxu0 0.0
  %778 = vmatpush1.msra.mxu0 %v748
  %779 = vmatprep.subr.mxu0 0.0
  %780 = vmatpush1.msra.mxu0 %v749
  %781 = vmatprep.subr.mxu0 0.0
  %782 = vmatpush1.msra.mxu0 %v750
  %783 = vmatprep.subr.mxu0 0.0
  %784 = vmatpush1.msra.mxu0 0.0
  %785 = vmatprep.subr.mxu0 0.0
  %786 = vmatpush1.msra.mxu0 0.0
  %787 = vmatprep.subr.mxu0 0.0
  %788 = vmatpush1.msra.mxu0 0.0
  %789 = vmatprep.subr.mxu0 0.0
  %790 = vmatpush1.msra.mxu0 0.0
  %791 = vmatprep.subr.mxu0 0.0
  %792 = vmatpush1.msra.mxu0 0.0
  %793 = vmatprep.subr.mxu0 0.0
  %794 = vmatpush1.msra.mxu0 0.0
  %795 = vmatprep.subr.mxu0 0.0
  %796 = vmatpush1.msra.mxu0 0.0
  %797 = vmatprep.subr.mxu0 0.0
  %798 = vmatpush1.msra.mxu0 0.0
  %799 = vmatprep.subr.mxu0 0.0
  %800 = vmatpush1.msra.mxu0 0.0
  %801 = vmatprep.subr.mxu0 0.0
  %802 = vmatpush1.msra.mxu0 0.0
  %803 = vmatprep.subr.mxu0 0.0
  %804 = vmatpush1.msra.mxu0 0.0
  %805 = vmatprep.subr.mxu0 0.0
  %806 = vmatpush1.msra.mxu0 0.0
  %807 = vmatprep.subr.mxu0 0.0
  %808 = vmatpush1.msra.mxu0 0.0
  %809 = vmatprep.subr.mxu0 0.0
  %810 = vmatpush1.msra.mxu0 0.0
  %811 = vmatprep.subr.mxu0 0.0
  %812 = vmatpush1.msra.mxu0 0.0
  %813 = vmatprep.subr.mxu0 0.0
  %814 = vmatpush1.msra.mxu0 0.0
  %815 = vmatprep.mubr.f32.mxu0 0.0
  %816 = vmatmul.mubr.f32.gmra.mrb[0].mxu0 %v527
  %v817 = vpop.f32.mrb[0].mxu0
  %v818 = vadd.f32 0.0, %v817
  %v819 = vpop.f32.mrb[0].mxu0
  %820 = vmatprep.mubr.f32.mxu0 0.0
  %821 = vmatmul.mubr.f32.gmra.mrb[0].mxu0 %v528
  %v822 = vpop.f32.mrb[0].mxu0
  %v823 = vadd.f32 0.0, %v822
  %v824 = vpop.f32.mrb[0].mxu0
  %825 = vmatprep.mubr.f32.mxu0 0.0
  %826 = vmatmul.mubr.f32.gmra.mrb[0].mxu0 %v529
  %v827 = vpop.f32.mrb[0].mxu0
  %v828 = vadd.f32 0.0, %v827
  %v829 = vpop.f32.mrb[0].mxu0
  %830 = vmatprep.mubr.f32.mxu0 0.0
  %831 = vmatmul.mubr.f32.gmra.mrb[0].mxu0 %v530
  %v832 = vpop.f32.mrb[0].mxu0
  %v833 = vadd.f32 0.0, %v832
  %v834 = vpop.f32.mrb[0].mxu0
  %835 = vdwg.mxu0
  %v836 = vadd.f32 %v716, %v818
  %v837 = vadd.f32 %v721, %v823
  %v838 = vadd.f32 %v726, %v828
  %v839 = vadd.f32 %v731, %v833
  %v840 = vadd.f32 %v836, %v837
  %v841 = vadd.f32 %v840, %v838
  %v842 = vadd.f32 %v841, %v839
  %v843 = vrot.slane %v842, 4
  %v844 = vadd.f32 %v842, %v843
  %v845 = vrot.slane %v844, 2
  %v846 = vadd.f32 %v844, %v845
  %v847 = vrot.slane %v846, 1
  %v848 = vadd.f32 %v846, %v847
  %v849 = vmul.f32 %v836, %v836
  %v850 = vmul.f32 %v837, %v837
  %v851 = vmul.f32 %v838, %v838
  %v852 = vmul.f32 %v839, %v839
  %v853 = vadd.f32 %v849, %v850
  %v854 = vadd.f32 %v853, %v851
  %v855 = vadd.f32 %v854, %v852
  %v856 = vrot.slane %v855, 4
  %v857 = vadd.f32 %v855, %v856
  %v858 = vrot.slane %v857, 2
  %v859 = vadd.f32 %v857, %v858
  %v860 = vrot.slane %v859, 1
  %v861 = vadd.f32 %v859, %v860
  %862 = vrot.lane.b32.xlu0 %v848, 8
  %v863 = vpop.permute.xlu0 %862
  %v864 = vadd.f32 %v848, %v863
  %865 = vrot.lane.b32.xlu0 %v861, 8
  %v866 = vpop.permute.xlu0 %865
  %v867 = vadd.f32 %v861, %v866
  %868 = vrot.lane.b32.xlu0 %v864, 16
  %v869 = vpop.permute.xlu0 %868
  %v870 = vadd.f32 %v864, %v869
  %871 = vrot.lane.b32.xlu0 %v867, 16
  %v872 = vpop.permute.xlu0 %871
  %v873 = vadd.f32 %v867, %v872
  %874 = vrot.lane.b32.xlu0 %v870, 32
  %v875 = vpop.permute.xlu0 %874
  %v876 = vadd.f32 %v870, %v875
  %877 = vrot.lane.b32.xlu0 %v873, 32
  %v878 = vpop.permute.xlu0 %877
  %v879 = vadd.f32 %v873, %v878
  %880 = vrot.lane.b32.xlu0 %v876, 64
  %v881 = vpop.permute.xlu0 %880
  %v882 = vadd.f32 %v876, %v881
  %883 = vrot.lane.b32.xlu0 %v879, 64
  %v884 = vpop.permute.xlu0 %883
  %v885 = vadd.f32 %v879, %v884
  %v886 = vmul.f32 %v882, 0.001953125
  %v887 = vmul.f32 %v885, 0.001953125
  %v888 = vmul.f32 %v886, %v886
  %v889 = vsub.f32 %v887, %v888
  %v890 = vld [vmem:[%s5] sm:$0x1]
  %v891 = vadd.f32 %v889, 1e-05
  %v892 = vrsqrt.pop %v891
  %v893 = vmul.f32 %v890, %v892
  %v894 = vld [vmem:[%s6] sm:$0x1]
  %v895 = vmul.f32 %v886, %v893
  %v896 = vsub.f32 %v894, %v895
  %v898 = vlaneseq
  %v899 = vshrl.u32 %v898, 7
  %v900 = vsub.s32 0, %v899
  %v901 = vrot.slane %v893, %v900
  %v903 = vmul.f32 %v836, %v901
  %v904 = vmul.f32 %v837, %v901
  %v905 = vmul.f32 %v838, %v901
  %v906 = vmul.f32 %v839, %v901
  %v908 = vlaneseq
  %v909 = vshrl.u32 %v908, 7
  %v910 = vsub.s32 0, %v909
  %v911 = vrot.slane %v896, %v910
  %v913 = vadd.f32 %v903, %v911
  %v914 = vadd.f32 %v904, %v911
  %v915 = vadd.f32 %v905, %v911
  %v916 = vadd.f32 %v906, %v911
  %v917 = vadd.f32 %v913, %v26
  %v918 = vadd.f32 %v914, %v27
  %v919 = vadd.f32 %v915, %v28
  %v920 = vadd.f32 %v916, %v29
  %v921 = vmax.f32 %v917, 0.0
  %v922 = vmax.f32 %v918, 0.0
  %v923 = vmax.f32 %v919, 0.0
  %v924 = vmax.f32 %v920, 0.0
  %925 = vst [vmem:[%s7] sm:$0xff] %v921
  %926 = vst [vmem:[%s7 + $0x8] sm:$0xff] %v922
  %927 = vst [vmem:[%s7 + $0x10] sm:$0xff] %v923
  %928 = vst [vmem:[%s7 + $0x18] sm:$0xff] %v924
  // Predicated region
  $region30: #{basic_block_pallas.1} parent=0 // pred_check
    _
  $region31: #{basic_block_pallas.1} parent=0 // pred_check_branch
    %930 = sbr.rel (0) target = $region33
  $region32: #{basic_block_pallas.1} parent=0 // pred_region
    _
  $region33: #{basic_block_pallas.1} parent=0 // pred_fallthru
    _
  // Predicated region
  $region34: #{basic_block_pallas.1} parent=0 // pred_check
    _
  $region35: #{basic_block_pallas.1} parent=0 // pred_check_branch
    %932 = sbr.rel (0) target = $region37
  $region36: #{basic_block_pallas.1} parent=0 // pred_region
    _
  $region37: #{basic_block_pallas.1} parent=0 // pred_fallthru
    _

</llo_original>
